<compile_context>
chip_gen: v5e
topology: v5e:2x2
jax: 0.10.0
libtpu: 0.0.40
codegen_flags: <defaults>
</compile_context>

<pallas_src>
import functools

import jax
import jax.numpy as jnp
from jax import lax
from jax.experimental import pallas as pl
from jax.experimental.pallas import tpu as pltpu


def _round_up(x, m):
    return ((x + m - 1) // m) * m


def _bert_classifier_kernel(bert_ref, user_ref, w1a_ref, w1b_ref, b1_ref,
                            gamma_ref, beta_ref, w2_ref, b2_ref,
                            probs_ref, dense_ref,
                            sum_ref, sumsq_ref,
                            *, batch, batch_tile):
    """Grid = (phase, batch_tile_index).

    phase 0: dense = relu(x @ W1 + b1) per tile; accumulate BN sum / sumsq.
    phase 1: recompute dense (cheaper in HBM bytes than re-reading it),
             fold BatchNorm into the classifier, matmul, softmax.
    """
    phase = pl.program_id(0)
    bt = pl.program_id(1)

    # ---- Linear 1: concat fused as a split-K matmul (bf16 MXU, f32 acc) ----
    # TODO(synk): dropout on the concatenated features is identity here.
    dense = jnp.dot(bert_ref[...], w1a_ref[...], preferred_element_type=jnp.float32)
    dense = dense + jnp.dot(user_ref[...], w1b_ref[...],
                            preferred_element_type=jnp.float32)
    dense = jnp.maximum(dense + b1_ref[...], 0.0)
    dense_ref[...] = dense.astype(dense_ref.dtype)

    # ---- Phase 0: one-pass BatchNorm statistics (sum, sum of squares) ----
    @pl.when(phase == 0)
    def _():
        @pl.when(bt == 0)
        def _():
            sum_ref[...] = jnp.zeros_like(sum_ref)
            sumsq_ref[...] = jnp.zeros_like(sumsq_ref)

        # Mask batch-padding rows out of the statistics.
        row = bt * batch_tile + lax.broadcasted_iota(jnp.int32, (batch_tile, 1), 0)
        d = jnp.where(row < batch, dense, 0.0)
        sum_ref[...] += jnp.sum(d, axis=0, keepdims=True)
        sumsq_ref[...] += jnp.sum(d * d, axis=0, keepdims=True)

    # ---- Phase 1: BN folded into classifier + Linear 2 + softmax ----
    @pl.when(phase == 1)
    def _():
        inv_n = jnp.float32(1.0 / batch)
        mean = sum_ref[...] * inv_n                                   # [1, Hc]
        var = jnp.maximum(sumsq_ref[...] * inv_n - mean * mean, 0.0)  # biased var
        scale = gamma_ref[...] * lax.rsqrt(var + 1e-5)                # [1, Hc]
        shift = beta_ref[...] - mean * scale                          # [1, Hc]

        # normalized @ W2 + b2 == (dense*scale) @ W2 + (shift @ W2 + b2):
        # never materializes `normalized` ([B, Hc]) between the two matmuls.
        scaled = (dense * scale).astype(w2_ref.dtype)                 # bf16 MXU operand
        logits = jnp.dot(scaled, w2_ref[...], preferred_element_type=jnp.float32)
        logits = logits + jnp.dot(shift.astype(w2_ref.dtype), w2_ref[...],
                                  preferred_element_type=jnp.float32)
        logits = logits + b2_ref[...]      # padded lanes carry -1e30 -> exp() == 0

        m = jnp.max(logits, axis=-1, keepdims=True)
        e = jnp.exp(logits - m)
        probs = e * pl.reciprocal(jnp.sum(e, axis=-1, keepdims=True), approx=True)
        probs_ref[...] = probs.astype(probs_ref.dtype)


def bert_classifier_forward(bert_pre, user_fea, params, *, max_batch_tile=128):
    """JAX wrapper: cast/pad, run the fused Pallas kernel, slice padding off."""
    B, H = bert_pre.shape
    _, U = user_fea.shape
    w1a, w1b = params["w1a"], params["w1b"]
    Hc = w1a.shape[1]
    w2 = params["w2"]              # [Hc, C_pad] bf16, padded columns are zero
    b2 = params["b2_padded"]       # [1, C_pad] f32, padded columns = -1e30
    C = params["categories"]
    C_pad = w2.shape[1]

    tb = min(_round_up(B, 8), max_batch_tile)   # batch tile (sublane-aligned)
    B_pad = _round_up(B, tb)
    nb = B_pad // tb

    def _pad_rows(x):
        return x if B_pad == B else jnp.pad(x, ((0, B_pad - B), (0, 0)))

    bert_b = _pad_rows(bert_pre.astype(jnp.bfloat16))
    user_b = _pad_rows(user_fea.astype(jnp.bfloat16))

    kernel = functools.partial(_bert_classifier_kernel, batch=B, batch_tile=tb)

    probs_pad, dense_pad = pl.pallas_call(
        kernel,
        out_shape=(
            jax.ShapeDtypeStruct((B_pad, C_pad), jnp.float32),   # probs (lane-padded)
            jax.ShapeDtypeStruct((B_pad, Hc), jnp.float32),      # dense_features
        ),
        grid_spec=pltpu.PrefetchScalarGridSpec(
            num_scalar_prefetch=0,
            grid=(2, nb),          # (phase: stats / finalize, batch tiles)
            in_specs=[
                pl.BlockSpec((tb, H), lambda p, i: (i, 0)),      # bert_pre tile
                pl.BlockSpec((tb, U), lambda p, i: (i, 0)),      # user_fea tile
                pl.BlockSpec((H, Hc), lambda p, i: (0, 0)),      # W1[:H]  (resident)
                pl.BlockSpec((U, Hc), lambda p, i: (0, 0)),      # W1[H:]  (resident)
                pl.BlockSpec((1, Hc), lambda p, i: (0, 0)),      # b1
                pl.BlockSpec((1, Hc), lambda p, i: (0, 0)),      # gamma
                pl.BlockSpec((1, Hc), lambda p, i: (0, 0)),      # beta
                pl.BlockSpec((Hc, C_pad), lambda p, i: (0, 0)),  # W2 (lane-padded)
                pl.BlockSpec((1, C_pad), lambda p, i: (0, 0)),   # b2 (lane-padded)
            ],
            out_specs=(
                # probs: during phase 0 every step maps to block 0 and the kernel
                # never writes it, so no stale/garbage writebacks reach HBM;
                # phase 1 writes each lane-dense (x128) block exactly once.
                pl.BlockSpec((tb, C_pad), lambda p, i: (p * i, 0)),
                pl.BlockSpec((tb, Hc), lambda p, i: (i, 0)),
            ),
            scratch_shapes=[pltpu.VMEM((1, Hc), jnp.float32),    # sum(dense)
                            pltpu.VMEM((1, Hc), jnp.float32)],   # sum(dense^2)
        ),
        compiler_params=pltpu.CompilerParams(
            # Both axes carry state (BN statistics reduction across batch tiles),
            # so neither can be split across cores -> "arbitrary".
            dimension_semantics=("arbitrary", "arbitrary"),
            vmem_limit_bytes=32 * 1024 * 1024,
        ),
    )(bert_b, user_b, w1a, w1b, params["b1"], params["gamma"], params["beta"],
      w2, b2)

    return probs_pad[:B, :C], dense_pad[:B, :]


def init_params(key, user_feature_input_size, hidden_size, classifier_hsz, categories,
                *, lane=128):
    """Matches the PyTorch __init__: xavier_normal_ weights, zero biases,
    BN gamma=1 / beta=0.  Linear weights are stored pre-transposed ([in, out]),
    split at the concat boundary, cast to bf16 for the MXU; the classifier is
    lane-padded to a multiple of 128 output columns."""
    in1 = hidden_size + user_feature_input_size
    k1, k2 = jax.random.split(key)

    std1 = (2.0 / (in1 + classifier_hsz)) ** 0.5
    w1 = std1 * jax.random.normal(k1, (in1, classifier_hsz), dtype=jnp.float32)

    std2 = (2.0 / (classifier_hsz + categories)) ** 0.5
    w2 = std2 * jax.random.normal(k2, (classifier_hsz, categories), dtype=jnp.float32)

    c_pad = _round_up(categories, lane)
    w2_pad = jnp.zeros((classifier_hsz, c_pad), jnp.float32).at[:, :categories].set(w2)
    # Padded logit lanes get a huge negative bias so softmax assigns them 0.
    b2_pad = jnp.full((1, c_pad), -1e30, jnp.float32).at[:, :categories].set(0.0)

    return {
        "w1a": w1[:hidden_size].astype(jnp.bfloat16),   # rows multiplied by bert_pre
        "w1b": w1[hidden_size:].astype(jnp.bfloat16),   # rows multiplied by user_fea
        "b1": jnp.zeros((1, classifier_hsz), jnp.float32),
        "gamma": jnp.ones((1, classifier_hsz), jnp.float32),
        "beta": jnp.zeros((1, classifier_hsz), jnp.float32),
        "w2": w2_pad.astype(jnp.bfloat16),
        "b2_padded": b2_pad,
        "categories": categories,
    }


def _reference_forward(bert_pre, user_fea, params):
    """Plain-JAX reference mirroring the PyTorch forward (dropout == identity),
    using the same bf16 parameters the kernel consumes."""
    bert = bert_pre.astype(jnp.bfloat16).astype(jnp.float32)
    user = user_fea.astype(jnp.bfloat16).astype(jnp.float32)
    w1a = params["w1a"].astype(jnp.float32)
    w1b = params["w1b"].astype(jnp.float32)
    C = params["categories"]
    w2 = params["w2"].astype(jnp.float32)[:, :C]
    b2 = params["b2_padded"][:, :C]
    dense = jnp.maximum(bert @ w1a + user @ w1b + params["b1"], 0.0)
    mean = jnp.mean(dense, axis=0, keepdims=True)
    var = jnp.mean((dense - mean) ** 2, axis=0, keepdims=True)
    normalized = (dense - mean) * lax.rsqrt(var + 1e-5) * params["gamma"] + params["beta"]
    logits = normalized @ w2 + b2
    probs = jax.nn.softmax(logits, axis=-1)
    return probs, dense


if __name__ == "__main__":
    # Small shapes consistent with the module's forward.
    batch = 8
    hidden_size = 32
    user_feature_input_size = 16
    classifier_hsz = 64
    categories = 8

    key = jax.random.PRNGKey(0)
    kp, kb, ku = jax.random.split(key, 3)

    params = init_params(kp, user_feature_input_size, hidden_size,
                         classifier_hsz, categories)

    bert_pre = jax.random.normal(kb, (batch, hidden_size), dtype=jnp.float32)
    user_fea = jax.random.normal(ku, (batch, user_feature_input_size), dtype=jnp.float32)

    probs, dense_features = bert_classifier_forward(bert_pre, user_fea, params)
    jax.block_until_ready((probs, dense_features))

    assert probs.shape == (batch, categories)
    assert dense_features.shape == (batch, classifier_hsz)
    # approx reciprocal in the softmax -> row sums are ~1 within ~1e-3
    assert jnp.allclose(jnp.sum(probs, axis=-1), 1.0, atol=3e-3)

    probs_ref, dense_ref = _reference_forward(bert_pre, user_fea, params)
    assert jnp.allclose(dense_features, dense_ref, atol=1e-3, rtol=1e-3)
    assert jnp.allclose(probs, probs_ref, atol=2e-2, rtol=2e-2)

    print("KERNEL_OK")
</pallas_src>

<mosaic_0001>
module attributes {stable_mosaic.version = 11 : i64} {
  func.func @_bert_classifier_kernel(%arg0: i32, %arg1: i32, %arg2: memref<8x32xbf16, #tpu.memory_space<vmem>>, %arg3: memref<8x16xbf16, #tpu.memory_space<vmem>>, %arg4: memref<32x64xbf16, #tpu.memory_space<vmem>>, %arg5: memref<16x64xbf16, #tpu.memory_space<vmem>>, %arg6: memref<1x64xf32, #tpu.memory_space<vmem>>, %arg7: memref<1x64xf32, #tpu.memory_space<vmem>>, %arg8: memref<1x64xf32, #tpu.memory_space<vmem>>, %arg9: memref<64x128xbf16, #tpu.memory_space<vmem>>, %arg10: memref<1x128xf32, #tpu.memory_space<vmem>>, %arg11: memref<8x128xf32, #tpu.memory_space<vmem>>, %arg12: memref<8x64xf32, #tpu.memory_space<vmem>>, %arg13: memref<1x64xf32, #tpu.memory_space<vmem>>, %arg14: memref<1x64xf32, #tpu.memory_space<vmem>>) attributes {dimension_semantics = [#tpu.dimension_semantics<arbitrary>, #tpu.dimension_semantics<arbitrary>], iteration_bounds = array<i64: 2, 1>, scalar_prefetch = 0 : i64, scratch_operands = 2 : i64, tpu.core_type = #tpu.core_type<tc>, window_params = [{transform_indices = @transform_0, window_bounds = array<i64: 8, 32>}, {transform_indices = @transform_1, window_bounds = array<i64: 8, 16>}, {pipeline_mode = #tpu.pipeline_mode<synchronous>, transform_indices = @transform_2, window_bounds = array<i64: 32, 64>}, {pipeline_mode = #tpu.pipeline_mode<synchronous>, transform_indices = @transform_3, window_bounds = array<i64: 16, 64>}, {pipeline_mode = #tpu.pipeline_mode<synchronous>, transform_indices = @transform_4, window_bounds = array<i64: 1, 64>}, {pipeline_mode = #tpu.pipeline_mode<synchronous>, transform_indices = @transform_5, window_bounds = array<i64: 1, 64>}, {pipeline_mode = #tpu.pipeline_mode<synchronous>, transform_indices = @transform_6, window_bounds = array<i64: 1, 64>}, {pipeline_mode = #tpu.pipeline_mode<synchronous>, transform_indices = @transform_7, window_bounds = array<i64: 64, 128>}, {pipeline_mode = #tpu.pipeline_mode<synchronous>, transform_indices = @transform_8, window_bounds = array<i64: 1, 128>}, {transform_indices = @transform_9, window_bounds = array<i64: 8, 128>}, {transform_indices = @transform_10, window_bounds = array<i64: 8, 64>}]} {
    %c0 = arith.constant 0 : index
    %c0_0 = arith.constant 0 : index
    %0 = vector.load %arg2[%c0, %c0_0] : memref<8x32xbf16, #tpu.memory_space<vmem>>, vector<8x32xbf16>
    %c0_1 = arith.constant 0 : index
    %c0_2 = arith.constant 0 : index
    %1 = vector.load %arg4[%c0_1, %c0_2] : memref<32x64xbf16, #tpu.memory_space<vmem>>, vector<32x64xbf16>
    %cst = arith.constant dense<0.000000e+00> : vector<8x64xf32>
    %2 = tpu.matmul %0, %1, %cst {dimension_numbers = #tpu.dot_dimension_numbers<[1], [0], [0], [1], [0, 0, 1, 1], [], []>} : vector<8x32xbf16>, vector<32x64xbf16>, vector<8x64xf32> -> vector<8x64xf32>
    %c0_3 = arith.constant 0 : index
    %c0_4 = arith.constant 0 : index
    %3 = vector.load %arg3[%c0_3, %c0_4] : memref<8x16xbf16, #tpu.memory_space<vmem>>, vector<8x16xbf16>
    %c0_5 = arith.constant 0 : index
    %c0_6 = arith.constant 0 : index
    %4 = vector.load %arg5[%c0_5, %c0_6] : memref<16x64xbf16, #tpu.memory_space<vmem>>, vector<16x64xbf16>
    %cst_7 = arith.constant dense<0.000000e+00> : vector<8x64xf32>
    %5 = tpu.matmul %3, %4, %cst_7 {dimension_numbers = #tpu.dot_dimension_numbers<[1], [0], [0], [1], [0, 0, 1, 1], [], []>} : vector<8x16xbf16>, vector<16x64xbf16>, vector<8x64xf32> -> vector<8x64xf32>
    %6 = arith.addf %2, %5 : vector<8x64xf32>
    %c0_8 = arith.constant 0 : index
    %c0_9 = arith.constant 0 : index
    %7 = vector.load %arg6[%c0_8, %c0_9] : memref<1x64xf32, #tpu.memory_space<vmem>>, vector<1x64xf32>
    %8 = vector.broadcast %7 : vector<1x64xf32> to vector<8x64xf32>
    %9 = arith.addf %6, %8 : vector<8x64xf32>
    %cst_10 = arith.constant 0.000000e+00 : f32
    %10 = vector.broadcast %cst_10 : f32 to vector<8x64xf32>
    %11 = arith.maximumf %9, %10 : vector<8x64xf32>
    %c0_11 = arith.constant 0 : index
    %c0_12 = arith.constant 0 : index
    %12 = vector.load %arg12[%c0_11, %c0_12] : memref<8x64xf32, #tpu.memory_space<vmem>>, vector<8x64xf32>
    tpu.vector_store %arg12[%c0_11, %c0_12], %11 {strides = array<i32>} : memref<8x64xf32, #tpu.memory_space<vmem>>, vector<8x64xf32>,
    %c0_i32 = arith.constant 0 : i32
    %13 = arith.cmpi eq, %arg0, %c0_i32 : i32
    %14 = arith.extui %13 : i1 to i32
    %c0_i32_13 = arith.constant 0 : i32
    %15 = arith.cmpi ne, %14, %c0_i32_13 : i32
    scf.if %15 {
      %c0_i32_15 = arith.constant 0 : i32
      %19 = arith.cmpi eq, %arg1, %c0_i32_15 : i32
      %20 = arith.extui %19 : i1 to i32
      %c0_i32_16 = arith.constant 0 : i32
      %21 = arith.cmpi ne, %20, %c0_i32_16 : i32
      scf.if %21 {
        %cst_29 = arith.constant 0.000000e+00 : f32
        %43 = vector.broadcast %cst_29 : f32 to vector<1x64xf32>
        %c0_30 = arith.constant 0 : index
        %c0_31 = arith.constant 0 : index
        %44 = vector.load %arg13[%c0_30, %c0_31] : memref<1x64xf32, #tpu.memory_space<vmem>>, vector<1x64xf32>
        tpu.vector_store %arg13[%c0_30, %c0_31], %43 {strides = array<i32>} : memref<1x64xf32, #tpu.memory_space<vmem>>, vector<1x64xf32>,
        %cst_32 = arith.constant 0.000000e+00 : f32
        %45 = vector.broadcast %cst_32 : f32 to vector<1x64xf32>
        %c0_33 = arith.constant 0 : index
        %c0_34 = arith.constant 0 : index
        %46 = vector.load %arg14[%c0_33, %c0_34] : memref<1x64xf32, #tpu.memory_space<vmem>>, vector<1x64xf32>
        tpu.vector_store %arg14[%c0_33, %c0_34], %45 {strides = array<i32>} : memref<1x64xf32, #tpu.memory_space<vmem>>, vector<1x64xf32>,
      } else {
      }
      %c8_i32 = arith.constant 8 : i32
      %22 = arith.muli %arg1, %c8_i32 : i32
      %23 = tpu.iota {dimensions = array<i32: 0>} : vector<8x1xi32>
      %24 = vector.broadcast %22 : i32 to vector<8x1xi32>
      %25 = arith.addi %24, %23 : vector<8x1xi32>
      %c8_i32_17 = arith.constant 8 : i32
      %26 = vector.broadcast %c8_i32_17 : i32 to vector<8x1xi32>
      %27 = arith.cmpi slt, %25, %26 : vector<8x1xi32>
      %cst_18 = arith.constant 0.000000e+00 : f32
      %28 = vector.shape_cast %27 : vector<8x1xi1> to vector<8x1xi1>
      %29 = vector.broadcast %28 : vector<8x1xi1> to vector<8x64xi1>
      %30 = vector.broadcast %cst_18 : f32 to vector<8x64xf32>
      %31 = arith.select %29, %11, %30 : vector<8x64xi1>, vector<8x64xf32>
      %c0_19 = arith.constant 0 : index
      %c0_20 = arith.constant 0 : index
      %32 = vector.load %arg13[%c0_19, %c0_20] : memref<1x64xf32, #tpu.memory_space<vmem>>, vector<1x64xf32>
      %cst_21 = arith.constant dense<0.000000e+00> : vector<64xf32>
      %33 = vector.multi_reduction <add>, %31, %cst_21 [0] : vector<8x64xf32> to vector<64xf32>
      %34 = vector.shape_cast %33 : vector<64xf32> to vector<1x64xf32>
      %35 = arith.addf %32, %34 : vector<1x64xf32>
      %c0_22 = arith.constant 0 : index
      %c0_23 = arith.constant 0 : index
      %36 = vector.load %arg13[%c0_22, %c0_23] : memref<1x64xf32, #tpu.memory_space<vmem>>, vector<1x64xf32>
      tpu.vector_store %arg13[%c0_22, %c0_23], %35 {strides = array<i32>} : memref<1x64xf32, #tpu.memory_space<vmem>>, vector<1x64xf32>,
      %c0_24 = arith.constant 0 : index
      %c0_25 = arith.constant 0 : index
      %37 = vector.load %arg14[%c0_24, %c0_25] : memref<1x64xf32, #tpu.memory_space<vmem>>, vector<1x64xf32>
      %38 = arith.mulf %31, %31 : vector<8x64xf32>
      %cst_26 = arith.constant dense<0.000000e+00> : vector<64xf32>
      %39 = vector.multi_reduction <add>, %38, %cst_26 [0] : vector<8x64xf32> to vector<64xf32>
      %40 = vector.shape_cast %39 : vector<64xf32> to vector<1x64xf32>
      %41 = arith.addf %37, %40 : vector<1x64xf32>
      %c0_27 = arith.constant 0 : index
      %c0_28 = arith.constant 0 : index
      %42 = vector.load %arg14[%c0_27, %c0_28] : memref<1x64xf32, #tpu.memory_space<vmem>>, vector<1x64xf32>
      tpu.vector_store %arg14[%c0_27, %c0_28], %41 {strides = array<i32>} : memref<1x64xf32, #tpu.memory_space<vmem>>, vector<1x64xf32>,
    } else {
    }
    %c1_i32 = arith.constant 1 : i32
    %16 = arith.cmpi eq, %arg0, %c1_i32 : i32
    %17 = arith.extui %16 : i1 to i32
    %c0_i32_14 = arith.constant 0 : i32
    %18 = arith.cmpi ne, %17, %c0_i32_14 : i32
    scf.if %18 {
      %c0_15 = arith.constant 0 : index
      %c0_16 = arith.constant 0 : index
      %19 = vector.load %arg13[%c0_15, %c0_16] : memref<1x64xf32, #tpu.memory_space<vmem>>, vector<1x64xf32>
      %cst_17 = arith.constant 1.250000e-01 : f32
      %20 = vector.broadcast %cst_17 : f32 to vector<1x64xf32>
      %21 = arith.mulf %19, %20 : vector<1x64xf32>
      %c0_18 = arith.constant 0 : index
      %c0_19 = arith.constant 0 : index
      %22 = vector.load %arg14[%c0_18, %c0_19] : memref<1x64xf32, #tpu.memory_space<vmem>>, vector<1x64xf32>
      %cst_20 = arith.constant 1.250000e-01 : f32
      %23 = vector.broadcast %cst_20 : f32 to vector<1x64xf32>
      %24 = arith.mulf %22, %23 : vector<1x64xf32>
      %25 = arith.mulf %21, %21 : vector<1x64xf32>
      %26 = arith.subf %24, %25 : vector<1x64xf32>
      %cst_21 = arith.constant 0.000000e+00 : f32
      %27 = vector.broadcast %cst_21 : f32 to vector<1x64xf32>
      %28 = arith.maximumf %26, %27 : vector<1x64xf32>
      %c0_22 = arith.constant 0 : index
      %c0_23 = arith.constant 0 : index
      %29 = vector.load %arg7[%c0_22, %c0_23] : memref<1x64xf32, #tpu.memory_space<vmem>>, vector<1x64xf32>
      %cst_24 = arith.constant 9.99999974E-6 : f32
      %30 = vector.broadcast %cst_24 : f32 to vector<1x64xf32>
      %31 = arith.addf %28, %30 : vector<1x64xf32>
      %32 = math.rsqrt %31 : vector<1x64xf32>
      %33 = arith.mulf %29, %32 : vector<1x64xf32>
      %c0_25 = arith.constant 0 : index
      %c0_26 = arith.constant 0 : index
      %34 = vector.load %arg8[%c0_25, %c0_26] : memref<1x64xf32, #tpu.memory_space<vmem>>, vector<1x64xf32>
      %35 = arith.mulf %21, %33 : vector<1x64xf32>
      %36 = arith.subf %34, %35 : vector<1x64xf32>
      %37 = vector.broadcast %33 : vector<1x64xf32> to vector<8x64xf32>
      %38 = arith.mulf %11, %37 : vector<8x64xf32>
      %39 = arith.truncf %38 : vector<8x64xf32> to vector<8x64xbf16>
      %c0_27 = arith.constant 0 : index
      %c0_28 = arith.constant 0 : index
      %40 = vector.load %arg9[%c0_27, %c0_28] : memref<64x128xbf16, #tpu.memory_space<vmem>>, vector<64x128xbf16>
      %cst_29 = arith.constant dense<0.000000e+00> : vector<8x128xf32>
      %41 = tpu.matmul %39, %40, %cst_29 {dimension_numbers = #tpu.dot_dimension_numbers<[1], [0], [0], [1], [0, 0, 1, 1], [], []>} : vector<8x64xbf16>, vector<64x128xbf16>, vector<8x128xf32> -> vector<8x128xf32>
      %42 = arith.truncf %36 : vector<1x64xf32> to vector<1x64xbf16>
      %c0_30 = arith.constant 0 : index
      %c0_31 = arith.constant 0 : index
      %43 = vector.load %arg9[%c0_30, %c0_31] : memref<64x128xbf16, #tpu.memory_space<vmem>>, vector<64x128xbf16>
      %cst_32 = arith.constant dense<0.000000e+00> : vector<1x128xf32>
      %44 = tpu.matmul %42, %43, %cst_32 {dimension_numbers = #tpu.dot_dimension_numbers<[1], [0], [0], [1], [0, 0, 1, 1], [], []>} : vector<1x64xbf16>, vector<64x128xbf16>, vector<1x128xf32> -> vector<1x128xf32>
      %45 = vector.broadcast %44 : vector<1x128xf32> to vector<8x128xf32>
      %46 = arith.addf %41, %45 : vector<8x128xf32>
      %c0_33 = arith.constant 0 : index
      %c0_34 = arith.constant 0 : index
      %47 = vector.load %arg10[%c0_33, %c0_34] : memref<1x128xf32, #tpu.memory_space<vmem>>, vector<1x128xf32>
      %48 = vector.broadcast %47 : vector<1x128xf32> to vector<8x128xf32>
      %49 = arith.addf %46, %48 : vector<8x128xf32>
      %cst_35 = arith.constant dense<0xFF800000> : vector<8xf32>
      %50 = vector.multi_reduction <maximumf>, %49, %cst_35 [1] : vector<8x128xf32> to vector<8xf32>
      %51 = vector.shape_cast %50 : vector<8xf32> to vector<8x1xf32>
      %52 = vector.broadcast %51 : vector<8x1xf32> to vector<8x128xf32>
      %53 = arith.subf %49, %52 : vector<8x128xf32>
      %54 = math.exp %53 : vector<8x128xf32>
      %cst_36 = arith.constant dense<0.000000e+00> : vector<8xf32>
      %55 = vector.multi_reduction <add>, %54, %cst_36 [1] : vector<8x128xf32> to vector<8xf32>
      %56 = vector.shape_cast %55 : vector<8xf32> to vector<8x1xf32>
      %57 = tpu.reciprocal %56 {approx = true} : vector<8x1xf32> -> vector<8x1xf32>
      %58 = vector.broadcast %57 : vector<8x1xf32> to vector<8x128xf32>
      %59 = arith.mulf %54, %58 : vector<8x128xf32>
      %c0_37 = arith.constant 0 : index
      %c0_38 = arith.constant 0 : index
      %60 = vector.load %arg11[%c0_37, %c0_38] : memref<8x128xf32, #tpu.memory_space<vmem>>, vector<8x128xf32>
      tpu.vector_store %arg11[%c0_37, %c0_38], %59 {strides = array<i32>} : memref<8x128xf32, #tpu.memory_space<vmem>>, vector<8x128xf32>,
    } else {
    }
    return
  }
  func.func @transform_0(%arg0: i32, %arg1: i32) -> (i32, i32) {
    %c0_i32 = arith.constant 0 : i32
    %c0_i32_0 = arith.constant 0 : i32
    return %arg1, %c0_i32 : i32, i32
  }
  func.func @transform_1(%arg0: i32, %arg1: i32) -> (i32, i32) {
    %c0_i32 = arith.constant 0 : i32
    %c0_i32_0 = arith.constant 0 : i32
    return %arg1, %c0_i32 : i32, i32
  }
  func.func @transform_2(%arg0: i32, %arg1: i32) -> (i32, i32) {
    %c0_i32 = arith.constant 0 : i32
    %c0_i32_0 = arith.constant 0 : i32
    %c0_i32_1 = arith.constant 0 : i32
    return %c0_i32, %c0_i32_0 : i32, i32
  }
  func.func @transform_3(%arg0: i32, %arg1: i32) -> (i32, i32) {
    %c0_i32 = arith.constant 0 : i32
    %c0_i32_0 = arith.constant 0 : i32
    %c0_i32_1 = arith.constant 0 : i32
    return %c0_i32, %c0_i32_0 : i32, i32
  }
  func.func @transform_4(%arg0: i32, %arg1: i32) -> (i32, i32) {
    %c0_i32 = arith.constant 0 : i32
    %c0_i32_0 = arith.constant 0 : i32
    %c0_i32_1 = arith.constant 0 : i32
    return %c0_i32, %c0_i32_0 : i32, i32
  }
  func.func @transform_5(%arg0: i32, %arg1: i32) -> (i32, i32) {
    %c0_i32 = arith.constant 0 : i32
    %c0_i32_0 = arith.constant 0 : i32
    %c0_i32_1 = arith.constant 0 : i32
    return %c0_i32, %c0_i32_0 : i32, i32
  }
  func.func @transform_6(%arg0: i32, %arg1: i32) -> (i32, i32) {
    %c0_i32 = arith.constant 0 : i32
    %c0_i32_0 = arith.constant 0 : i32
    %c0_i32_1 = arith.constant 0 : i32
    return %c0_i32, %c0_i32_0 : i32, i32
  }
  func.func @transform_7(%arg0: i32, %arg1: i32) -> (i32, i32) {
    %c0_i32 = arith.constant 0 : i32
    %c0_i32_0 = arith.constant 0 : i32
    %c0_i32_1 = arith.constant 0 : i32
    return %c0_i32, %c0_i32_0 : i32, i32
  }
  func.func @transform_8(%arg0: i32, %arg1: i32) -> (i32, i32) {
    %c0_i32 = arith.constant 0 : i32
    %c0_i32_0 = arith.constant 0 : i32
    %c0_i32_1 = arith.constant 0 : i32
    return %c0_i32, %c0_i32_0 : i32, i32
  }
  func.func @transform_9(%arg0: i32, %arg1: i32) -> (i32, i32) {
    %0 = arith.muli %arg0, %arg1 : i32
    %c0_i32 = arith.constant 0 : i32
    %c0_i32_0 = arith.constant 0 : i32
    return %0, %c0_i32 : i32, i32
  }
  func.func @transform_10(%arg0: i32, %arg1: i32) -> (i32, i32) {
    %c0_i32 = arith.constant 0 : i32
    %c0_i32_0 = arith.constant 0 : i32
    return %arg1, %c0_i32 : i32, i32
  }
}

</mosaic_0001>

<llo_original>
// kernel: tpu_custom_call.1
$region0: #{tpu_custom_call.1}
  #allocation0 [shape = 'u32[]', space=smem, size = 0x4, offset = 0x4, fixed_abs, tag = 'smem constant byte address 0x4 - core index']
  #allocation1 [shape = 'u32[72,128]{1,0:T(1,128)}', space=vmem, size = 0x9000, scoped, tag = 'internal scratch']
  #allocation2 [shape = 'f32[1,64]{1,0:T(1,128)}', space=vmem, size = 0x200, scoped, tag = 'scratch operand']
  #allocation3 [shape = 'f32[1,64]{1,0:T(1,128)}', space=vmem, size = 0x200, scoped, tag = 'scratch operand']
  %s0 = inlined_call_operand.hbm [shape: bf16[8,32], index: 0, kind: input, shape index: {}]
  %s1 = inlined_call_operand.hbm [shape: bf16[8,16], index: 1, kind: input, shape index: {}]
  %s2 = inlined_call_operand.hbm [shape: bf16[32,64], index: 2, kind: input, shape index: {}]
  %s3 = inlined_call_operand.hbm [shape: bf16[16,64], index: 3, kind: input, shape index: {}]
  %s4 = inlined_call_operand.vmem [shape: f32[1,64], index: 4, kind: input, shape index: {}]
  %s5 = inlined_call_operand.vmem [shape: f32[1,64], index: 5, kind: input, shape index: {}]
  %s6 = inlined_call_operand.vmem [shape: f32[1,64], index: 6, kind: input, shape index: {}]
  %s7 = inlined_call_operand.hbm [shape: bf16[64,128], index: 7, kind: input, shape index: {}]
  %s8 = inlined_call_operand.vmem [shape: f32[1,128], index: 8, kind: input, shape index: {}]
  %s9 = inlined_call_operand.hbm [shape: f32[8,128], index: 9, kind: output, shape index: {0}]
  %s10 = inlined_call_operand.hbm [shape: f32[8,64], index: 10, kind: output, shape index: {1}]
  %11 = xla_tuple %s9, %s10
  %s12 = sld [smem:[#allocation0]]
  $region109: #{tpu_custom_call.1} parent=0
    _
  %s14 = ssub.s32 1, %s12
  %s15 = scalar_select 0, %s14, %s12
  $region1: #{tpu_custom_call.1} parent=0
    #allocation4 [shape = 'u8[2048]{0}', space=vmem, size = 0x800, scoped, tag = 'input window, operand 0, single buffered']
    #allocation5 [shape = 's32[2]{0}', space=sflag, size = 0x8, scoped, tag = 'scoped memory for tpu_custom_call.1']
    #allocation6 [shape = 's32[2]{0}', space=sflag, size = 0x8, scoped, tag = 'scoped memory for tpu_custom_call.1']
    #allocation7 [shape = 'u8[2048]{0}', space=vmem, size = 0x800, scoped, tag = 'input window, operand 1, single buffered']
    #allocation8 [shape = 's32[1]{0}', space=sflag, size = 0x4, scoped, tag = 'scoped memory for tpu_custom_call.1']
    #allocation9 [shape = 'u8[8192]{0}', space=vmem, size = 0x2000, scoped, tag = 'input window, operand 2, single buffered']
    #allocation10 [shape = 'u8[4096]{0}', space=vmem, size = 0x1000, scoped, tag = 'input window, operand 3, single buffered']
    #allocation11 [shape = 's32[1]{0}', space=sflag, size = 0x4, scoped, tag = 'scoped memory for tpu_custom_call.1']
    #allocation12 [shape = 'u8[16384]{0}', space=vmem, size = 0x4000, scoped, tag = 'input window, operand 7, single buffered']
    #allocation13 [shape = 'u8[8192]{0}', space=vmem, size = 0x2000, scoped, tag = 'output window, operand 0']
    #allocation14 [shape = 'u8[4096]{0}', space=vmem, size = 0x1000, scoped, tag = 'output window, operand 1, single buffered']
    #allocation15 [shape = 's32[1]{0}', space=sflag, size = 0x4, scoped, tag = 'scoped memory for tpu_custom_call.1']
    %16 = vsyncpa [#allocation5], 0
    %17 = vsyncpa [#allocation8], 0
    %18 = vsyncpa [#allocation11], 0
    %19 = vsyncpa [#allocation6], 0
    %s20 = scalar_lea.sflag [#allocation6], 1
    %21 = vsyncpa %s20, 0
    %22 = vsyncpa [#allocation15], 0
    loop: start=0, step=1, limit=4
    $region2: #{tpu_custom_call.1} parent=1 // loop_pre_header
      _
    $region3: #{tpu_custom_call.1} parent=1 // loop_header
      %s24 = sphi 0, %s28
      %p25 = scmp.ge.s32.totalorder %s24, 4
      %s31 = sphi 0, %s43
      %s32 = sphi 0, %s39
      %s33 = sphi 0, %s31
      %s34 = sphi 0, %s32
      %s35 = sphi 0, %s33
      %s36 = sphi 0, %s34
      %s46 = sphi 0, %s48
      %s49 = sphi 0, %s46
      %s50 = sphi 0, %s49
      %s66 = sphi 0, %s50
      %s72 = sphi 0, %s74
      %s75 = sphi 0, %s72
      %s76 = sphi 0, %s75
      %s92 = sphi 0, %s76
      %s96 = sphi 0, %s96
      %s98 = sphi 0, %s96
      %s99 = sphi 0, %s98
      %s113 = sphi 0, %s99
      %s117 = sphi 0, %s117
      %s119 = sphi 0, %s117
      %s120 = sphi 0, %s119
      %s134 = sphi 0, %s120
      %s138 = sphi 0, %s138
      %s140 = sphi 0, %s138
      %s141 = sphi 0, %s140
      %s155 = sphi 0, %s141
      %s159 = sphi 0, %s159
      %s161 = sphi 0, %s159
      %s162 = sphi 0, %s161
      %s176 = sphi 0, %s162
      %s180 = sphi 0, %s180
      %s182 = sphi 0, %s180
      %s183 = sphi 0, %s182
      %s197 = sphi 0, %s183
      %s201 = sphi 0, %s201
      %s203 = sphi 0, %s201
      %s204 = sphi 0, %s203
      %s218 = sphi 0, %s204
      %s222 = sphi 0, %s222
      %s224 = sphi 0, %s222
      %s225 = sphi 0, %s224
      %s239 = sphi 0, %s225
      %s247 = sphi 0, %s249
      %s250 = sphi 0, %s247
      %s251 = sphi 0, %s250
      %s267 = sphi 0, %s251
      %s273 = sphi 0, %s275
      %s276 = sphi 0, %s273
      %s277 = sphi 0, %s276
      %s293 = sphi 0, %s277
    $region4: #{tpu_custom_call.1} parent=1 // loop_header_branch
      %27 = sbr.rel (%p25) target = $region8
    $region5: #{tpu_custom_call.1} parent=1 // loop_body
      %s29 = ssub.s32 %s24, 1
      %s30 = ssub.s32 %s24, 2
      %s37 = sadd.s32 1, %s32
      %p38 = scmp.ge.s32.totalorder %s37, 1
      %s39 = scalar_select %p38, 0, %s37
      %s40 = sadd.s32 1, %s31
      %s41 = scalar_select %p38, %s40, %s31
      %p42 = scmp.ge.s32.totalorder %s41, 2
      %s43 = scalar_select %p42, 0, %s41
      %s44 = ssub.s32 %s32, %s39
      %p45 = scmp.eq.s32.totalorder %s44, 0
      %s47 = sadd.s32 %s46, 1
      %s48 = scalar_select %p45, %s46, %s47
      %p51 = pneg %p45
      %p52 = scmp.eq.s32.totalorder %s24, 1
      %p53 = por %p51, %p52
      %p54 = scmp.ne.s32.totalorder %s46, %s49
      %p55 = scmp.eq.s32.totalorder %s24, 0
      %p56 = por %p54, %p55
      %p57 = scmp.ne.s32.totalorder %s46, %s49
      %p58 = scmp.eq.s32.totalorder %s29, 1
      %p59 = por %p57, %p58
      %p60 = scmp.ne.s32.totalorder %s49, %s50
      %p61 = scmp.eq.s32.totalorder %s29, 0
      %p62 = por %p60, %p61
      %p63 = scmp.ne.s32.totalorder %s49, %s50
      %p64 = scmp.eq.s32.totalorder %s30, 1
      %p65 = por %p63, %p64
      %p67 = scmp.ne.s32.totalorder %s50, %s66
      %p68 = scmp.eq.s32.totalorder %s30, 0
      %p69 = por %p67, %p68
      %s70 = ssub.s32 %s32, %s39
      %p71 = scmp.eq.s32.totalorder %s70, 0
      %s73 = sadd.s32 %s72, 1
      %s74 = scalar_select %p71, %s72, %s73
      %p77 = pneg %p71
      %p78 = scmp.eq.s32.totalorder %s24, 1
      %p79 = por %p77, %p78
      %p80 = scmp.ne.s32.totalorder %s72, %s75
      %p81 = scmp.eq.s32.totalorder %s24, 0
      %p82 = por %p80, %p81
      %p83 = scmp.ne.s32.totalorder %s72, %s75
      %p84 = scmp.eq.s32.totalorder %s29, 1
      %p85 = por %p83, %p84
      %p86 = scmp.ne.s32.totalorder %s75, %s76
      %p87 = scmp.eq.s32.totalorder %s29, 0
      %p88 = por %p86, %p87
      %p89 = scmp.ne.s32.totalorder %s75, %s76
      %p90 = scmp.eq.s32.totalorder %s30, 1
      %p91 = por %p89, %p90
      %p93 = scmp.ne.s32.totalorder %s76, %s92
      %p94 = scmp.eq.s32.totalorder %s30, 0
      %p95 = por %p93, %p94
      %s97 = sadd.s32 %s96, 1
      %p100 = scmp.eq.s32.totalorder %s24, 1
      %p101 = scmp.ne.s32.totalorder %s96, %s98
      %p102 = scmp.eq.s32.totalorder %s24, 0
      %p103 = por %p101, %p102
      %p104 = scmp.ne.s32.totalorder %s96, %s98
      %p105 = scmp.eq.s32.totalorder %s29, 1
      %p106 = por %p104, %p105
      %p107 = scmp.ne.s32.totalorder %s98, %s99
      %p108 = scmp.eq.s32.totalorder %s29, 0
      %p109 = por %p107, %p108
      %p110 = scmp.ne.s32.totalorder %s98, %s99
      %p111 = scmp.eq.s32.totalorder %s30, 1
      %p112 = por %p110, %p111
      %p114 = scmp.ne.s32.totalorder %s99, %s113
      %p115 = scmp.eq.s32.totalorder %s30, 0
      %p116 = por %p114, %p115
      %s118 = sadd.s32 %s117, 1
      %p121 = scmp.eq.s32.totalorder %s24, 1
      %p122 = scmp.ne.s32.totalorder %s117, %s119
      %p123 = scmp.eq.s32.totalorder %s24, 0
      %p124 = por %p122, %p123
      %p125 = scmp.ne.s32.totalorder %s117, %s119
      %p126 = scmp.eq.s32.totalorder %s29, 1
      %p127 = por %p125, %p126
      %p128 = scmp.ne.s32.totalorder %s119, %s120
      %p129 = scmp.eq.s32.totalorder %s29, 0
      %p130 = por %p128, %p129
      %p131 = scmp.ne.s32.totalorder %s119, %s120
      %p132 = scmp.eq.s32.totalorder %s30, 1
      %p133 = por %p131, %p132
      %p135 = scmp.ne.s32.totalorder %s120, %s134
      %p136 = scmp.eq.s32.totalorder %s30, 0
      %p137 = por %p135, %p136
      %s139 = sadd.s32 %s138, 1
      %p142 = scmp.eq.s32.totalorder %s24, 1
      %p143 = scmp.ne.s32.totalorder %s138, %s140
      %p144 = scmp.eq.s32.totalorder %s24, 0
      %p145 = por %p143, %p144
      %p146 = scmp.ne.s32.totalorder %s138, %s140
      %p147 = scmp.eq.s32.totalorder %s29, 1
      %p148 = por %p146, %p147
      %p149 = scmp.ne.s32.totalorder %s140, %s141
      %p150 = scmp.eq.s32.totalorder %s29, 0
      %p151 = por %p149, %p150
      %p152 = scmp.ne.s32.totalorder %s140, %s141
      %p153 = scmp.eq.s32.totalorder %s30, 1
      %p154 = por %p152, %p153
      %p156 = scmp.ne.s32.totalorder %s141, %s155
      %p157 = scmp.eq.s32.totalorder %s30, 0
      %p158 = por %p156, %p157
      %s160 = sadd.s32 %s159, 1
      %p163 = scmp.eq.s32.totalorder %s24, 1
      %p164 = scmp.ne.s32.totalorder %s159, %s161
      %p165 = scmp.eq.s32.totalorder %s24, 0
      %p166 = por %p164, %p165
      %p167 = scmp.ne.s32.totalorder %s159, %s161
      %p168 = scmp.eq.s32.totalorder %s29, 1
      %p169 = por %p167, %p168
      %p170 = scmp.ne.s32.totalorder %s161, %s162
      %p171 = scmp.eq.s32.totalorder %s29, 0
      %p172 = por %p170, %p171
      %p173 = scmp.ne.s32.totalorder %s161, %s162
      %p174 = scmp.eq.s32.totalorder %s30, 1
      %p175 = por %p173, %p174
      %p177 = scmp.ne.s32.totalorder %s162, %s176
      %p178 = scmp.eq.s32.totalorder %s30, 0
      %p179 = por %p177, %p178
      %s181 = sadd.s32 %s180, 1
      %p184 = scmp.eq.s32.totalorder %s24, 1
      %p185 = scmp.ne.s32.totalorder %s180, %s182
      %p186 = scmp.eq.s32.totalorder %s24, 0
      %p187 = por %p185, %p186
      %p188 = scmp.ne.s32.totalorder %s180, %s182
      %p189 = scmp.eq.s32.totalorder %s29, 1
      %p190 = por %p188, %p189
      %p191 = scmp.ne.s32.totalorder %s182, %s183
      %p192 = scmp.eq.s32.totalorder %s29, 0
      %p193 = por %p191, %p192
      %p194 = scmp.ne.s32.totalorder %s182, %s183
      %p195 = scmp.eq.s32.totalorder %s30, 1
      %p196 = por %p194, %p195
      %p198 = scmp.ne.s32.totalorder %s183, %s197
      %p199 = scmp.eq.s32.totalorder %s30, 0
      %p200 = por %p198, %p199
      %s202 = sadd.s32 %s201, 1
      %p205 = scmp.eq.s32.totalorder %s24, 1
      %p206 = scmp.ne.s32.totalorder %s201, %s203
      %p207 = scmp.eq.s32.totalorder %s24, 0
      %p208 = por %p206, %p207
      %p209 = scmp.ne.s32.totalorder %s201, %s203
      %p210 = scmp.eq.s32.totalorder %s29, 1
      %p211 = por %p209, %p210
      %p212 = scmp.ne.s32.totalorder %s203, %s204
      %p213 = scmp.eq.s32.totalorder %s29, 0
      %p214 = por %p212, %p213
      %p215 = scmp.ne.s32.totalorder %s203, %s204
      %p216 = scmp.eq.s32.totalorder %s30, 1
      %p217 = por %p215, %p216
      %p219 = scmp.ne.s32.totalorder %s204, %s218
      %p220 = scmp.eq.s32.totalorder %s30, 0
      %p221 = por %p219, %p220
      %s223 = sadd.s32 %s222, 1
      %p226 = scmp.eq.s32.totalorder %s24, 1
      %p227 = scmp.ne.s32.totalorder %s222, %s224
      %p228 = scmp.eq.s32.totalorder %s24, 0
      %p229 = por %p227, %p228
      %p230 = scmp.ne.s32.totalorder %s222, %s224
      %p231 = scmp.eq.s32.totalorder %s29, 1
      %p232 = por %p230, %p231
      %p233 = scmp.ne.s32.totalorder %s224, %s225
      %p234 = scmp.eq.s32.totalorder %s29, 0
      %p235 = por %p233, %p234
      %p236 = scmp.ne.s32.totalorder %s224, %s225
      %p237 = scmp.eq.s32.totalorder %s30, 1
      %p238 = por %p236, %p237
      %p240 = scmp.ne.s32.totalorder %s225, %s239
      %p241 = scmp.eq.s32.totalorder %s30, 0
      %p242 = por %p240, %p241
      %s243 = smul.u32 %s31, %s32
      %s244 = smul.u32 %s43, %s39
      %s245 = ssub.s32 %s243, %s244
      %p246 = scmp.eq.s32.totalorder %s245, 0
      %s248 = sadd.s32 %s247, 1
      %s249 = scalar_select %p246, %s247, %s248
      %p252 = pneg %p246
      %p253 = scmp.eq.s32.totalorder %s24, 1
      %p254 = por %p252, %p253
      %p255 = scmp.ne.s32.totalorder %s247, %s250
      %p256 = scmp.eq.s32.totalorder %s24, 0
      %p257 = por %p255, %p256
      %p258 = scmp.ne.s32.totalorder %s247, %s250
      %p259 = scmp.eq.s32.totalorder %s29, 1
      %p260 = por %p258, %p259
      %p261 = scmp.ne.s32.totalorder %s250, %s251
      %p262 = scmp.eq.s32.totalorder %s29, 0
      %p263 = por %p261, %p262
      %p264 = scmp.ne.s32.totalorder %s250, %s251
      %p265 = scmp.eq.s32.totalorder %s30, 1
      %p266 = por %p264, %p265
      %p268 = scmp.ne.s32.totalorder %s251, %s267
      %p269 = scmp.eq.s32.totalorder %s30, 0
      %p270 = por %p268, %p269
      %s271 = ssub.s32 %s32, %s39
      %p272 = scmp.eq.s32.totalorder %s271, 0
      %s274 = sadd.s32 %s273, 1
      %s275 = scalar_select %p272, %s273, %s274
      %p278 = pneg %p272
      %p279 = scmp.eq.s32.totalorder %s24, 1
      %p280 = por %p278, %p279
      %p281 = scmp.ne.s32.totalorder %s273, %s276
      %p282 = scmp.eq.s32.totalorder %s24, 0
      %p283 = por %p281, %p282
      %p284 = scmp.ne.s32.totalorder %s273, %s276
      %p285 = scmp.eq.s32.totalorder %s29, 1
      %p286 = por %p284, %p285
      %p287 = scmp.ne.s32.totalorder %s276, %s277
      %p288 = scmp.eq.s32.totalorder %s29, 0
      %p289 = por %p287, %p288
      %p290 = scmp.ne.s32.totalorder %s276, %s277
      %p291 = scmp.eq.s32.totalorder %s30, 1
      %p292 = por %p290, %p291
      %p294 = scmp.ne.s32.totalorder %s277, %s293
      %p295 = scmp.eq.s32.totalorder %s30, 0
      %p296 = por %p294, %p295
      %p297 = scmp.le.s32.totalorder 1, %s24
      %p298 = scmp.lt.s32.totalorder %s24, 3
      %p299 = pnand %p297, %p298
      %p300 = pneg %p299
      // Predicated region
      $region9: #{tpu_custom_call.1} parent=5 // pred_check
        _
      $region10: #{tpu_custom_call.1} parent=5 // pred_check_branch
        %302 = sbr.rel (%p299) target = $region12
      $region11: #{tpu_custom_call.1} parent=5 // pred_region
        %s303 = ssub.s32 %s24, 1
        // Predicated region
        $region13: #{tpu_custom_call.1} parent=11 // pred_check
          %p304 = pneg %p62
        $region14: #{tpu_custom_call.1} parent=11 // pred_check_branch
          %306 = sbr.rel (%p304) target = $region16
        $region15: #{tpu_custom_call.1} parent=11 // pred_region
          %308 = vsyncadd [#allocation5], 0
          %s309 = smul.addr %s34, 4
          %s310 = scalar_lea.hbm %s0, %s309
          %s312 = sshll.u32 %s310, 4
          %s313 = int_to_ptr.hbm [resolvable:$true] %s312
          %s314 = sshll.u32 [#allocation4], 4
          %s315 = int_to_ptr.vmem [resolvable:$true] %s314
          %317 = dma.hbm_to_vmem [thread:$0]  %s313, 64, %s315, [#allocation5]
        $region16: #{tpu_custom_call.1} parent=11 // pred_fallthru
          _
        // Predicated region
        $region17: #{tpu_custom_call.1} parent=11 // pred_check
          %p318 = pneg %p88
        $region18: #{tpu_custom_call.1} parent=11 // pred_check_branch
          %320 = sbr.rel (%p318) target = $region20
        $region19: #{tpu_custom_call.1} parent=11 // pred_region
          %322 = vsyncadd [#allocation8], 0
          %s323 = smul.addr %s34, 4
          %s324 = scalar_lea.hbm %s1, %s323
          %s326 = sshll.u32 %s324, 4
          %s327 = int_to_ptr.hbm [resolvable:$true] %s326
          %s328 = sshll.u32 [#allocation7], 4
          %s329 = int_to_ptr.vmem [resolvable:$true] %s328
          %331 = dma.hbm_to_vmem [thread:$0]  %s327, 64, %s329, [#allocation8]
        $region20: #{tpu_custom_call.1} parent=11 // pred_fallthru
          _
        // Predicated region
        $region21: #{tpu_custom_call.1} parent=11 // pred_check
          %p332 = pneg %p109
        $region22: #{tpu_custom_call.1} parent=11 // pred_check_branch
          %334 = sbr.rel (%p332) target = $region24
        $region23: #{tpu_custom_call.1} parent=11 // pred_region
          %336 = vsyncadd [#allocation8], 0
          %s337 = sshll.u32 %s2, 4
          %s338 = int_to_ptr.hbm [resolvable:$true] %s337
          %s339 = sshll.u32 [#allocation9], 4
          %s340 = int_to_ptr.vmem [resolvable:$true] %s339
          %345 = dma.hbm_to_vmem [thread:$0]  %s338, 256, %s340, [#allocation8], 64, 64, 4
        $region24: #{tpu_custom_call.1} parent=11 // pred_fallthru
          _
        // Predicated region
        $region25: #{tpu_custom_call.1} parent=11 // pred_check
          %p346 = pneg %p130
        $region26: #{tpu_custom_call.1} parent=11 // pred_check_branch
          %348 = sbr.rel (%p346) target = $region28
        $region27: #{tpu_custom_call.1} parent=11 // pred_region
          %350 = vsyncadd [#allocation11], 0
          %s351 = sshll.u32 %s3, 4
          %s352 = int_to_ptr.hbm [resolvable:$true] %s351
          %s353 = sshll.u32 [#allocation10], 4
          %s354 = int_to_ptr.vmem [resolvable:$true] %s353
          %359 = dma.hbm_to_vmem [thread:$0]  %s352, 128, %s354, [#allocation11], 64, 64, 4
        $region28: #{tpu_custom_call.1} parent=11 // pred_fallthru
          _
        // Predicated region
        $region29: #{tpu_custom_call.1} parent=11 // pred_check
          %p360 = pneg %p151
        $region30: #{tpu_custom_call.1} parent=11 // pred_check_branch
          %362 = sbr.rel (%p360) target = $region32
        $region31: #{tpu_custom_call.1} parent=11 // pred_region
          _
        $region32: #{tpu_custom_call.1} parent=11 // pred_fallthru
          _
        // Predicated region
        $region33: #{tpu_custom_call.1} parent=11 // pred_check
          %p363 = pneg %p172
        $region34: #{tpu_custom_call.1} parent=11 // pred_check_branch
          %365 = sbr.rel (%p363) target = $region36
        $region35: #{tpu_custom_call.1} parent=11 // pred_region
          _
        $region36: #{tpu_custom_call.1} parent=11 // pred_fallthru
          _
        // Predicated region
        $region37: #{tpu_custom_call.1} parent=11 // pred_check
          %p366 = pneg %p193
        $region38: #{tpu_custom_call.1} parent=11 // pred_check_branch
          %368 = sbr.rel (%p366) target = $region40
        $region39: #{tpu_custom_call.1} parent=11 // pred_region
          _
        $region40: #{tpu_custom_call.1} parent=11 // pred_fallthru
          _
        // Predicated region
        $region41: #{tpu_custom_call.1} parent=11 // pred_check
          %p369 = pneg %p214
        $region42: #{tpu_custom_call.1} parent=11 // pred_check_branch
          %371 = sbr.rel (%p369) target = $region44
        $region43: #{tpu_custom_call.1} parent=11 // pred_region
          %373 = vsyncadd [#allocation11], 0
          %s374 = sshll.u32 %s7, 4
          %s375 = int_to_ptr.hbm [resolvable:$true] %s374
          %s376 = sshll.u32 [#allocation12], 4
          %s377 = int_to_ptr.vmem [resolvable:$true] %s376
          %382 = dma.hbm_to_vmem [thread:$0]  %s375, 512, %s377, [#allocation11], 64, 64, 4
        $region44: #{tpu_custom_call.1} parent=11 // pred_fallthru
          _
        // Predicated region
        $region45: #{tpu_custom_call.1} parent=11 // pred_check
          %p383 = pneg %p235
        $region46: #{tpu_custom_call.1} parent=11 // pred_check_branch
          %385 = sbr.rel (%p383) target = $region48
        $region47: #{tpu_custom_call.1} parent=11 // pred_region
          _
        $region48: #{tpu_custom_call.1} parent=11 // pred_fallthru
          _
      $region12: #{tpu_custom_call.1} parent=5 // pred_fallthru
        _
      %p386 = scmp.lt.s32.totalorder %s24, 2
      // Predicated region
      $region49: #{tpu_custom_call.1} parent=5 // pred_check
        %p387 = pneg %p386
      $region50: #{tpu_custom_call.1} parent=5 // pred_check_branch
        %389 = sbr.rel (%p387) target = $region52
      $region51: #{tpu_custom_call.1} parent=5 // pred_region
        _
      $region52: #{tpu_custom_call.1} parent=5 // pred_fallthru
        _
      %p390 = scmp.le.s32.totalorder 1, %s24
      %p391 = scmp.lt.s32.totalorder %s24, 3
      %p392 = pnand %p390, %p391
      %p393 = pneg %p392
      // Predicated region
      $region53: #{tpu_custom_call.1} parent=5 // pred_check
        _
      $region54: #{tpu_custom_call.1} parent=5 // pred_check_branch
        %395 = sbr.rel (%p392) target = $region56
      $region55: #{tpu_custom_call.1} parent=5 // pred_region
        %s396 = ssub.s32 %s24, 1
        // Predicated region
        $region57: #{tpu_custom_call.1} parent=55 // pred_check
          %p397 = pneg %p62
        $region58: #{tpu_custom_call.1} parent=55 // pred_check_branch
          %399 = sbr.rel (%p397) target = $region60
        $region59: #{tpu_custom_call.1} parent=55 // pred_region
          %401 = dma.done [#allocation5], 64
        $region60: #{tpu_custom_call.1} parent=55 // pred_fallthru
          _
        // Predicated region
        $region61: #{tpu_custom_call.1} parent=55 // pred_check
          %p402 = pneg %p88
        $region62: #{tpu_custom_call.1} parent=55 // pred_check_branch
          %404 = sbr.rel (%p402) target = $region64
        $region63: #{tpu_custom_call.1} parent=55 // pred_region
          %406 = dma.done [#allocation8], 64
        $region64: #{tpu_custom_call.1} parent=55 // pred_fallthru
          _
        // Predicated region
        $region65: #{tpu_custom_call.1} parent=55 // pred_check
          %p407 = pneg %p109
        $region66: #{tpu_custom_call.1} parent=55 // pred_check_branch
          %409 = sbr.rel (%p407) target = $region68
        $region67: #{tpu_custom_call.1} parent=55 // pred_region
          %411 = dma.done [#allocation8], 256
        $region68: #{tpu_custom_call.1} parent=55 // pred_fallthru
          _
        // Predicated region
        $region69: #{tpu_custom_call.1} parent=55 // pred_check
          %p412 = pneg %p130
        $region70: #{tpu_custom_call.1} parent=55 // pred_check_branch
          %414 = sbr.rel (%p412) target = $region72
        $region71: #{tpu_custom_call.1} parent=55 // pred_region
          %416 = dma.done [#allocation11], 128
        $region72: #{tpu_custom_call.1} parent=55 // pred_fallthru
          _
        // Predicated region
        $region73: #{tpu_custom_call.1} parent=55 // pred_check
          %p417 = pneg %p214
        $region74: #{tpu_custom_call.1} parent=55 // pred_check_branch
          %419 = sbr.rel (%p417) target = $region76
        $region75: #{tpu_custom_call.1} parent=55 // pred_region
          %421 = dma.done [#allocation11], 512
        $region76: #{tpu_custom_call.1} parent=55 // pred_fallthru
          _
        %p422 = pneg %p62
        %p423 = pneg %p59
        %p424 = pneg %p88
        %p425 = pneg %p85
        %p426 = pneg %p109
        %p427 = pneg %p106
        %p428 = pneg %p130
        %p429 = pneg %p127
        %p430 = pneg %p151
        %p431 = pneg %p148
        %p432 = pneg %p172
        %p433 = pneg %p169
        %p434 = pneg %p193
        %p435 = pneg %p190
        %p436 = pneg %p214
        %p437 = pneg %p211
        %p438 = pneg %p235
        %p439 = pneg %p232
        %p440 = pneg %p263
        %p441 = pneg %p260
        %s442 = sand.u32 %s250, 1
        %s443 = scalar_lea.sflag [#allocation6], %s442
        %s444 = sand.u32 %s250, 1
        %s445 = smul.addr %s444, 8
        %s446 = scalar_lea.vmem [#allocation13], %s445
        %p447 = pneg %p289
        %p448 = pneg %p286
        %s449 = smul.u32 %s33, %s34
        %v451 = vld [vmem:[#allocation4] sm:$0xf]
        %v452 = vld [vmem:[#allocation9] sm:$0xf]
        %v453 = vld [vmem:[#allocation9 + $0x4] sm:$0xf]
        %v454 = vld [vmem:[#allocation9 + $0x8] sm:$0xf]
        %v455 = vld [vmem:[#allocation9 + $0xc] sm:$0xf]
        %v456 = vld [vmem:[#allocation7] sm:$0xf]
        %v457 = vld [vmem:[#allocation10] sm:$0xf]
        %v458 = vld [vmem:[#allocation10 + $0x4] sm:$0xf]
        %v461 = vunpack.c.l.b16 %v457
        %v462 = vunpack.c.l.b16 %v458
        %v463 = vpack.c.b16 %v462, %v461
        %vm465 = vcmask 130048
        %v467 = vsel %vm465, %v456, 0
        %469 = vmatpush.bf16.msra.mxu0 0
        %470 = vmatpush.bf16.msra.mxu0 0
        %471 = vmatpush.bf16.msra.mxu0 0
        %472 = vmatpush.bf16.msra.mxu0 0
        %473 = vmatpush.bf16.msra.mxu0 0
        %474 = vmatpush.bf16.msra.mxu0 0
        %475 = vmatpush.bf16.msra.mxu0 0
        %476 = vmatpush.bf16.msra.mxu0 %v463
        %477 = vmatmul.bf16.gmra.mxu0 %v467
        %v478 = vpop.f32.mrf.mxu0
        %v479 = vadd.f32 0.0, %v478
        %v480 = vpop.f32.mrf.mxu0
        %481 = vdwg.mxu0
        %v486 = vunpack.c.l.b16 %v452
        %v487 = vunpack.c.l.b16 %v453
        %v488 = vunpack.c.l.b16 %v454
        %v489 = vunpack.c.l.b16 %v455
        %v490 = vpack.c.b16 %v487, %v486
        %v491 = vpack.c.b16 %v489, %v488
        %vm494 = vcmask 261120
        %v496 = vsel %vm494, %v451, 0
        %498 = vmatpush.bf16.msra.mxu0 0
        %499 = vmatpush.bf16.msra.mxu0 0
        %500 = vmatpush.bf16.msra.mxu0 0
        %501 = vmatpush.bf16.msra.mxu0 0
        %502 = vmatpush.bf16.msra.mxu0 0
        %503 = vmatpush.bf16.msra.mxu0 0
        %504 = vmatpush.bf16.msra.mxu0 %v491
        %505 = vmatpush.bf16.msra.mxu0 %v490
        %506 = vmatmul.bf16.gmra.mxu0 %v496
        %v507 = vpop.f32.mrf.mxu0
        %v508 = vadd.f32 %v479, %v507
        %v509 = vpop.f32.mrf.mxu0
        %510 = vdwg.mxu0
        %v511 = vld [vmem:[%s4] sm:$0x1]
        %v513 = vperm.slane %v511, 0
        %v515 = vadd.f32 %v508, %v513
        %v516 = vmax.f32 %v515, 0.0
        %vm517 = vcmask 523264
        %518 = vst.msk [vmem:[#allocation14] sm:$0xff] %vm517, %v516
        %p519 = scmp.eq.s32.totalorder %s33, 0
        // Predicated region
        $region77: #{tpu_custom_call.1} parent=55 // pred_check
          %p520 = pneg %p519
        $region78: #{tpu_custom_call.1} parent=55 // pred_check_branch
          %522 = sbr.rel (%p520) target = $region80
        $region79: #{tpu_custom_call.1} parent=55 // pred_region
          %p523 = scmp.eq.s32.totalorder %s34, 0
          // Predicated region
          $region81: #{tpu_custom_call.1} parent=79 // pred_check
            %p524 = pneg %p523
          $region82: #{tpu_custom_call.1} parent=79 // pred_check_branch
            %526 = sbr.rel (%p524) target = $region84
          $region83: #{tpu_custom_call.1} parent=79 // pred_region
            %vm527 = vcmask 516096
            %528 = vst.msk [vmem:[#allocation2] sm:$0x1] %vm527, 0.0
            %529 = vst.msk [vmem:[#allocation3] sm:$0x1] %vm527, 0.0
          $region84: #{tpu_custom_call.1} parent=79 // pred_fallthru
            _
          %s530 = smul.u32 %s34, 8
          %v531 = vlaneseq
          %v532 = vshrl.u32 %v531, 7
          %v533 = vstv %s530
          %v534 = vadd.s32 %v533, %v532
          %vm535 = vcmp.lt.s32.totalorder %v534, 8
          %v536 = vsel %vm535, 1, 0
          %vm537 = vcmp.eq.s32.totalorder %v536, 1
          %v538 = vsel %vm537, %v516, 0.0
          %v539 = vld [vmem:[#allocation2] sm:$0x1]
          %v540 = vsel %vm517, %v538, 0.0
          %v541 = vrot.slane %v540, 4
          %v542 = vadd.f32 %v540, %v541
          %v543 = vrot.slane %v542, 2
          %v544 = vadd.f32 %v542, %v543
          %v545 = vrot.slane %v544, 1
          %v546 = vadd.f32 %v544, %v545
          %v547 = vadd.f32 %v539, %v546
          %vm548 = vcmask 516096
          %549 = vst.msk [vmem:[#allocation2] sm:$0x1] %vm548, %v547
          %v550 = vld [vmem:[#allocation3] sm:$0x1]
          %v551 = vmul.f32 %v538, %v538
          %v552 = vsel %vm517, %v551, 0.0
          %v553 = vrot.slane %v552, 4
          %v554 = vadd.f32 %v552, %v553
          %v555 = vrot.slane %v554, 2
          %v556 = vadd.f32 %v554, %v555
          %v557 = vrot.slane %v556, 1
          %v558 = vadd.f32 %v556, %v557
          %v559 = vadd.f32 %v550, %v558
          %560 = vst.msk [vmem:[#allocation3] sm:$0x1] %vm548, %v559
        $region80: #{tpu_custom_call.1} parent=55 // pred_fallthru
          _
        %p561 = scmp.eq.s32.totalorder %s33, 1
        // Predicated region
        $region85: #{tpu_custom_call.1} parent=55 // pred_check
          %p562 = pneg %p561
        $region86: #{tpu_custom_call.1} parent=55 // pred_check_branch
          %564 = sbr.rel (%p562) target = $region88
        $region87: #{tpu_custom_call.1} parent=55 // pred_region
          %v565 = vld [vmem:[#allocation2] sm:$0x1]
          %v566 = vmul.f32 %v565, 0.125
          %v567 = vld [vmem:[#allocation3] sm:$0x1]
          %v568 = vmul.f32 %v567, 0.125
          %v569 = vmul.f32 %v566, %v566
          %v570 = vsub.f32 %v568, %v569
          %v571 = vmax.f32 %v570, 0.0
          %v572 = vld [vmem:[%s5] sm:$0x1]
          %v573 = vadd.f32 %v571, 1e-05
          %v574 = vrsqrt.pop %v573
          %v575 = vmul.f32 %v574, %v573
          %v576 = vmul.f32 %v575, %v574
          %v577 = vmul.f32 0.5, %v576
          %v578 = vsub.f32 1.5, %v577
          %v579 = vmul.f32 %v574, %v578
          %vm580 = vweird.f32 %v573
          %vm581 = vweird.f32 %v574
          %vm582 = vmor %vm580, %vm581
          %v583 = vsel %vm582, %v574, %v579
          %v584 = vmul.f32 %v572, %v583
          %v585 = vld [vmem:[%s6] sm:$0x1]
          %v586 = vmul.f32 %v566, %v584
          %v587 = vsub.f32 %v585, %v586
          %v589 = vperm.slane %v584, 0
          %v591 = vmul.f32 %v516, %v589
          %v592 = vpack.c.bf16 %v591, %v591
          %v593 = vld [vmem:[#allocation12] sm:$0xf]
          %v594 = vld [vmem:[#allocation12 + $0x4] sm:$0xf]
          %v595 = vld [vmem:[#allocation12 + $0x8] sm:$0xf]
          %v596 = vld [vmem:[#allocation12 + $0xc] sm:$0xf]
          %v597 = vld [vmem:[#allocation12 + $0x10] sm:$0xf]
          %v598 = vld [vmem:[#allocation12 + $0x14] sm:$0xf]
          %v599 = vld [vmem:[#allocation12 + $0x18] sm:$0xf]
          %v600 = vld [vmem:[#allocation12 + $0x1c] sm:$0xf]
          %v601 = vpack.c.bf16 %v587, %v587
          %v610 = vunpack.c.l.b16 %v593
          %v611 = vunpack.c.l.b16 %v594
          %v612 = vunpack.c.l.b16 %v595
          %v613 = vunpack.c.l.b16 %v596
          %v614 = vunpack.c.l.b16 %v597
          %v615 = vunpack.c.l.b16 %v598
          %v616 = vunpack.c.l.b16 %v599
          %v617 = vunpack.c.l.b16 %v600
          %v618 = vpack.c.b16 %v611, %v610
          %v619 = vpack.c.b16 %v613, %v612
          %v620 = vpack.c.b16 %v615, %v614
          %v621 = vpack.c.b16 %v617, %v616
          %v627 = vsel %vm517, %v601, 0
          %629 = vmatpush.bf16.msra.mxu0 0
          %630 = vmatpush.bf16.msra.mxu0 0
          %631 = vmatpush.bf16.msra.mxu0 0
          %632 = vmatpush.bf16.msra.mxu0 0
          %633 = vmatpush.bf16.msra.mxu0 %v621
          %634 = vmatpush.bf16.msra.mxu0 %v620
          %635 = vmatpush.bf16.msra.mxu0 %v619
          %636 = vmatpush.bf16.msra.mxu0 %v618
          %637 = vmatmul.bf16.gmra.mxu0 %v627
          %v638 = vpop.f32.mrf.mxu0
          %v639 = vadd.f32 0.0, %v638
          %v640 = vpop.f32.mrf.mxu0
          %641 = vdwg.mxu0
          %v642 = vperm.slane %v639, 0
          %v644 = vsel %vm517, %v592, 0
          %646 = vmatpush.bf16.msra.mxu0 0
          %647 = vmatpush.bf16.msra.mxu0 0
          %648 = vmatpush.bf16.msra.mxu0 0
          %649 = vmatpush.bf16.msra.mxu0 0
          %650 = vmatpush.bf16.msra.mxu0 %v621
          %651 = vmatpush.bf16.msra.mxu0 %v620
          %652 = vmatpush.bf16.msra.mxu0 %v619
          %653 = vmatpush.bf16.msra.mxu0 %v618
          %654 = vmatmul.bf16.gmra.mxu0 %v644
          %v655 = vpop.f32.mrf.mxu0
          %v656 = vadd.f32 %v642, %v655
          %v657 = vpop.f32.mrf.mxu0
          %658 = vdwg.mxu0
          %v659 = vld [vmem:[%s8] sm:$0x1]
          %v661 = vperm.slane %v659, 0
          %v663 = vadd.f32 %v656, %v661
          %664 = vmax.xlane.f32.xlu0 %v663
          %v665 = vpop.xlane.xlu0 %664
          %v666 = vsub.f32 %v663, %v665
          %v667 = vmul.f32 %v666, 1.442695
          %v668 = vpow.pop %v667
          %669 = vadd.xlane.f32.xlu0 %v668
          %v670 = vpop.xlane.xlu0 %669
          %v671 = vrcp.pop %v670
          %v672 = vmul.f32 %v668, %v671
          %673 = vst [vmem:[%s446] sm:$0xff] %v672
        $region88: #{tpu_custom_call.1} parent=55 // pred_fallthru
          _
        %s674 = sand.u32 %s250, 1
        %s675 = scalar_lea.sflag [#allocation6], %s674
        %s676 = sand.u32 %s250, 1
        %s677 = smul.addr %s676, 8
        %s678 = scalar_lea.vmem [#allocation13], %s677
        // Predicated region
        $region89: #{tpu_custom_call.1} parent=55 // pred_check
          %p679 = pneg %p260
        $region90: #{tpu_custom_call.1} parent=55 // pred_check_branch
          %681 = sbr.rel (%p679) target = $region92
        $region91: #{tpu_custom_call.1} parent=55 // pred_region
          %s682 = smul.u32 %s33, %s34
          %684 = vsyncadd %s675, 0
          %s685 = smul.addr %s682, 8
          %s686 = scalar_lea.hbm %s9, %s685
          %s688 = sshll.u32 %s678, 4
          %s689 = int_to_ptr.vmem [resolvable:$true] %s688
          %s690 = sshll.u32 %s686, 4
          %s691 = int_to_ptr.hbm [resolvable:$true] %s690
          %693 = dma.vmem_to_hbm [thread:$0]  %s689, 128, %s691, %s675
        $region92: #{tpu_custom_call.1} parent=55 // pred_fallthru
          _
        // Predicated region
        $region93: #{tpu_custom_call.1} parent=55 // pred_check
          %p694 = pneg %p286
        $region94: #{tpu_custom_call.1} parent=55 // pred_check_branch
          %696 = sbr.rel (%p694) target = $region96
        $region95: #{tpu_custom_call.1} parent=55 // pred_region
          %698 = vsyncadd [#allocation15], 0
          %s699 = smul.addr %s34, 8
          %s700 = scalar_lea.hbm %s10, %s699
          %s702 = sshll.u32 [#allocation14], 4
          %s703 = int_to_ptr.vmem [resolvable:$true] %s702
          %s704 = sshll.u32 %s700, 4
          %s705 = int_to_ptr.hbm [resolvable:$true] %s704
          %707 = dma.vmem_to_hbm [thread:$0]  %s703, 128, %s705, [#allocation15]
        $region96: #{tpu_custom_call.1} parent=55 // pred_fallthru
          _
        // Predicated region
        $region97: #{tpu_custom_call.1} parent=55 // pred_check
          %p708 = pneg %p286
        $region98: #{tpu_custom_call.1} parent=55 // pred_check_branch
          %710 = sbr.rel (%p708) target = $region100
        $region99: #{tpu_custom_call.1} parent=55 // pred_region
          %712 = dma.done [#allocation15], 128
        $region100: #{tpu_custom_call.1} parent=55 // pred_fallthru
          _
      $region56: #{tpu_custom_call.1} parent=5 // pred_fallthru
        _
      %p713 = scmp.le.s32.totalorder 2, %s24
      // Predicated region
      $region101: #{tpu_custom_call.1} parent=5 // pred_check
        %p714 = pneg %p713
      $region102: #{tpu_custom_call.1} parent=5 // pred_check_branch
        %716 = sbr.rel (%p714) target = $region104
      $region103: #{tpu_custom_call.1} parent=5 // pred_region
        %s717 = ssub.s32 %s24, 2
        // Predicated region
        $region105: #{tpu_custom_call.1} parent=103 // pred_check
          %p718 = pneg %p266
        $region106: #{tpu_custom_call.1} parent=103 // pred_check_branch
          %720 = sbr.rel (%p718) target = $region108
        $region107: #{tpu_custom_call.1} parent=103 // pred_region
          %s721 = sand.u32 %s251, 1
          %s722 = scalar_lea.sflag [#allocation6], %s721
          %s723 = sand.u32 %s251, 1
          %s724 = smul.addr %s723, 8
          %s725 = scalar_lea.vmem [#allocation13], %s724
          %727 = dma.done %s722, 128
        $region108: #{tpu_custom_call.1} parent=103 // pred_fallthru
          _
      $region104: #{tpu_custom_call.1} parent=5 // pred_fallthru
        _
    $region6: #{tpu_custom_call.1} parent=1 // loop_footer
      %s28 = sadd.s32 1, %s24
    $region7: #{tpu_custom_call.1} parent=1 // loop_footer_branch
      %23 = sbr.rel target = $region3
    $region8: #{tpu_custom_call.1} parent=1 // loop_exit
      _
    %728 = vsyncpa [#allocation5], 1
    %s729 = scalar_lea.sflag [#allocation5], 1
    %730 = vsyncpa %s729, 1
    %731 = vsyncpa [#allocation8], 1
    %732 = vsyncpa [#allocation11], 1
    %733 = vsyncpa [#allocation6], 1
    %s734 = scalar_lea.sflag [#allocation6], 1
    %735 = vsyncpa %s734, 1
    %736 = vsyncpa [#allocation15], 1

</llo_original>
